<compile_context>
chip_gen: v7x
topology: tpu7x:2x2x1
jax: 0.10.0
libtpu: 0.0.40
codegen_flags: <defaults>
</compile_context>

<pallas_src>
import functools

import jax
import jax.numpy as jnp
from jax.experimental import pallas as pl
from jax.experimental.pallas import tpu as pltpu


def _round_up(x, m):
    return ((x + m - 1) // m) * m


def _mlp_fused_kernel(x_ref, *refs, use_bf16_matmul=False):
    """Fused forward: h = tanh(h @ W_i + b_i) for every layer, in one kernel.

    refs = (w0, b0, w1, b1, ..., wN, bN, o_ref). Only the x tile is read from
    HBM per grid step and only the (lane-dense) output tile is written back;
    everything in between stays on-chip.
    """
    o_ref = refs[-1]
    wb_refs = refs[:-1]
    num_layers = len(wb_refs) // 2

    h = x_ref[...].astype(jnp.float32)
    for i in range(num_layers):
        w = wb_refs[2 * i][...]
        b = wb_refs[2 * i + 1][...].astype(jnp.float32)  # (1, dout), broadcasts over rows
        din = h.shape[-1]
        if din <= 4:
            # VPU path: a couple of broadcast FMAs beats wasting a full
            # 128/256-deep MXU pass on a 2-wide contraction.
            y = h[:, 0:1] * w[0:1, :].astype(jnp.float32)
            for k in range(1, din):
                y = y + h[:, k:k + 1] * w[k:k + 1, :].astype(jnp.float32)
            y = y + b
        else:
            if use_bf16_matmul:
                # bf16 MXU inputs, f32 accumulate (v6e/v7x win; keep off on v5e-
                # critical paths or when strict f32 parity is required).
                y = jnp.dot(h.astype(jnp.bfloat16), w.astype(jnp.bfloat16),
                            preferred_element_type=jnp.float32) + b
            else:
                y = jnp.dot(h, w.astype(jnp.float32),
                            preferred_element_type=jnp.float32) + b
        h = jnp.tanh(y)  # EUP transcendental, kept in f32 (v5e has no bf16 EUP)
    o_ref[...] = h.astype(o_ref.dtype)


@functools.partial(jax.jit, static_argnames=("block_rows", "use_bf16_matmul"))
def mlp_forward(x, params, *, block_rows=4096, use_bf16_matmul=False):
    """Forward pass matching the PyTorch MLP (tanh after every Linear).

    x: (B, d0) f32; params: tuple of (w, b) with w: (d_i, d_{i+1}), b: (1, d_{i+1}).
    """
    assert block_rows % 8 == 0, "block_rows must be a multiple of 8 (sublanes)"
    B, din = x.shape
    dout = params[-1][0].shape[1]

    # --- Lane-dense output: pad last layer width to a multiple of 128. -------
    dout_pad = _round_up(dout, 128)
    params = [tuple(p) for p in params]
    if dout_pad != dout:
        w_last, b_last = params[-1]
        w_last = jnp.pad(w_last, ((0, 0), (0, dout_pad - dout)))
        b_last = jnp.pad(b_last, ((0, 0), (0, dout_pad - dout)))
        params[-1] = (w_last, b_last)

    # --- Batch tiling: pad rows so the grid divides evenly. ------------------
    tb = min(block_rows, _round_up(B, 8))
    bp = _round_up(B, tb)
    if bp != B:
        x = jnp.pad(x, ((0, bp - B), (0, 0)))

    # --- Specs: x/out tiled over the batch grid; weights/biases resident. ----
    flat_params = []
    in_specs = [pl.BlockSpec((tb, din), lambda i: (i, 0))]
    for (w, b) in params:
        flat_params.extend([w, b])
        in_specs.append(pl.BlockSpec(w.shape, lambda i: (0, 0)))  # stays in VMEM
        in_specs.append(pl.BlockSpec(b.shape, lambda i: (0, 0)))  # across all steps

    flops = 2 * bp * sum(w.shape[0] * w.shape[1] for (w, _) in params)
    transcendentals = bp * sum(w.shape[1] for (w, _) in params)
    bytes_accessed = 4 * (bp * din + bp * dout_pad
                          + sum(w.size + b.size for (w, b) in params))

    kernel = functools.partial(_mlp_fused_kernel, use_bf16_matmul=use_bf16_matmul)

    out = pl.pallas_call(
        kernel,
        out_shape=jax.ShapeDtypeStruct((bp, dout_pad), x.dtype),
        grid=(bp // tb,),
        in_specs=in_specs,
        out_specs=pl.BlockSpec((tb, dout_pad), lambda i: (i, 0)),
        compiler_params=pltpu.CompilerParams(
            dimension_semantics=("parallel",)),  # megacore sharding on v7x
        cost_estimate=pl.CostEstimate(
            flops=flops,
            transcendentals=transcendentals,
            bytes_accessed=bytes_accessed),
    )(x, *flat_params)

    # Strip batch padding and the lane-padding columns.
    return out[:B, :dout]


def init_mlp_params(key, seq_net):
    """Deterministic init mimicking torch.nn.Linear default U[-1/sqrt(fan_in), +1/sqrt(fan_in)]."""
    params = []
    for i in range(len(seq_net) - 1):
        din, dout = seq_net[i], seq_net[i + 1]
        key, kw, kb = jax.random.split(key, 3)
        bound = 1.0 / jnp.sqrt(jnp.float32(din))
        w = jax.random.uniform(kw, (din, dout), jnp.float32, -bound, bound)
        b = jax.random.uniform(kb, (1, dout), jnp.float32, -bound, bound)
        params.append((w, b))
    return params


def mlp_forward_ref(x, params):
    # Pure-JAX reference for sanity checking.
    for (w, b) in params:
        x = jnp.tanh(x @ w + b)
    return x


if __name__ == "__main__":
    # Typical PINN-Poisson MLP: 2 input coords -> 32 -> 32 -> 1 output.
    seq_net = [2, 32, 32, 1]
    batch = 20  # deliberately not a multiple of 8 to exercise row padding

    key = jax.random.PRNGKey(0)
    key, kx = jax.random.split(key)
    x = jax.random.normal(kx, (batch, seq_net[0]), jnp.float32)

    params = init_mlp_params(jax.random.PRNGKey(0), seq_net)

    # Small block_rows here so the demo exercises a multi-step batch grid;
    # production use would leave the default (block_rows=4096).
    out = mlp_forward(x, tuple(params), block_rows=8)
    out = jax.block_until_ready(out)

    ref = mlp_forward_ref(x, params)
    assert out.shape == (batch, seq_net[-1]), out.shape
    assert jnp.allclose(out, ref, atol=1e-5, rtol=1e-5), (out, ref)

    print("KERNEL_OK")
</pallas_src>

<mosaic_0001>
module attributes {stable_mosaic.version = 11 : i64} {
  func.func @_mlp_fused_kernel(%arg0: i32, %arg1: memref<8x2xf32, #tpu.memory_space<vmem>>, %arg2: memref<2x32xf32, #tpu.memory_space<vmem>>, %arg3: memref<1x32xf32, #tpu.memory_space<vmem>>, %arg4: memref<32x32xf32, #tpu.memory_space<vmem>>, %arg5: memref<1x32xf32, #tpu.memory_space<vmem>>, %arg6: memref<32x128xf32, #tpu.memory_space<vmem>>, %arg7: memref<1x128xf32, #tpu.memory_space<vmem>>, %arg8: memref<8x128xf32, #tpu.memory_space<vmem>>) attributes {dimension_semantics = [#tpu.dimension_semantics<parallel>], iteration_bounds = array<i64: 3>, scalar_prefetch = 0 : i64, scratch_operands = 0 : i64, tpu.core_type = #tpu.core_type<tc>, window_params = [{transform_indices = @transform_0, window_bounds = array<i64: 8, 2>}, {pipeline_mode = #tpu.pipeline_mode<synchronous>, transform_indices = @transform_1, window_bounds = array<i64: 2, 32>}, {pipeline_mode = #tpu.pipeline_mode<synchronous>, transform_indices = @transform_2, window_bounds = array<i64: 1, 32>}, {pipeline_mode = #tpu.pipeline_mode<synchronous>, transform_indices = @transform_3, window_bounds = array<i64: 32, 32>}, {pipeline_mode = #tpu.pipeline_mode<synchronous>, transform_indices = @transform_4, window_bounds = array<i64: 1, 32>}, {pipeline_mode = #tpu.pipeline_mode<synchronous>, transform_indices = @transform_5, window_bounds = array<i64: 32, 128>}, {pipeline_mode = #tpu.pipeline_mode<synchronous>, transform_indices = @transform_6, window_bounds = array<i64: 1, 128>}, {transform_indices = @transform_7, window_bounds = array<i64: 8, 128>}]} {
    %c0 = arith.constant 0 : index
    %c0_0 = arith.constant 0 : index
    %0 = vector.load %arg1[%c0, %c0_0] : memref<8x2xf32, #tpu.memory_space<vmem>>, vector<8x2xf32>
    %c0_1 = arith.constant 0 : index
    %c0_2 = arith.constant 0 : index
    %1 = vector.load %arg2[%c0_1, %c0_2] : memref<2x32xf32, #tpu.memory_space<vmem>>, vector<2x32xf32>
    %c0_3 = arith.constant 0 : index
    %c0_4 = arith.constant 0 : index
    %2 = vector.load %arg3[%c0_3, %c0_4] : memref<1x32xf32, #tpu.memory_space<vmem>>, vector<1x32xf32>
    %3 = vector.extract_strided_slice %0 {offsets = [0, 0], sizes = [8, 1], strides = [1, 1]} : vector<8x2xf32> to vector<8x1xf32>
    %4 = vector.extract_strided_slice %1 {offsets = [0, 0], sizes = [1, 32], strides = [1, 1]} : vector<2x32xf32> to vector<1x32xf32>
    %5 = vector.broadcast %3 : vector<8x1xf32> to vector<8x32xf32>
    %6 = vector.broadcast %4 : vector<1x32xf32> to vector<8x32xf32>
    %7 = arith.mulf %5, %6 : vector<8x32xf32>
    %8 = vector.extract_strided_slice %0 {offsets = [0, 1], sizes = [8, 1], strides = [1, 1]} : vector<8x2xf32> to vector<8x1xf32>
    %9 = vector.extract_strided_slice %1 {offsets = [1, 0], sizes = [1, 32], strides = [1, 1]} : vector<2x32xf32> to vector<1x32xf32>
    %10 = vector.broadcast %8 : vector<8x1xf32> to vector<8x32xf32>
    %11 = vector.broadcast %9 : vector<1x32xf32> to vector<8x32xf32>
    %12 = arith.mulf %10, %11 : vector<8x32xf32>
    %13 = arith.addf %7, %12 : vector<8x32xf32>
    %14 = vector.broadcast %2 : vector<1x32xf32> to vector<8x32xf32>
    %15 = arith.addf %13, %14 : vector<8x32xf32>
    %16 = math.tanh %15 : vector<8x32xf32>
    %c0_5 = arith.constant 0 : index
    %c0_6 = arith.constant 0 : index
    %17 = vector.load %arg4[%c0_5, %c0_6] : memref<32x32xf32, #tpu.memory_space<vmem>>, vector<32x32xf32>
    %c0_7 = arith.constant 0 : index
    %c0_8 = arith.constant 0 : index
    %18 = vector.load %arg5[%c0_7, %c0_8] : memref<1x32xf32, #tpu.memory_space<vmem>>, vector<1x32xf32>
    %cst = arith.constant dense<0.000000e+00> : vector<8x32xf32>
    %19 = tpu.matmul %16, %17, %cst {dimension_numbers = #tpu.dot_dimension_numbers<[1], [0], [0], [1], [0, 0, 1, 1], [], []>} : vector<8x32xf32>, vector<32x32xf32>, vector<8x32xf32> -> vector<8x32xf32>
    %20 = vector.broadcast %18 : vector<1x32xf32> to vector<8x32xf32>
    %21 = arith.addf %19, %20 : vector<8x32xf32>
    %22 = math.tanh %21 : vector<8x32xf32>
    %c0_9 = arith.constant 0 : index
    %c0_10 = arith.constant 0 : index
    %23 = vector.load %arg6[%c0_9, %c0_10] : memref<32x128xf32, #tpu.memory_space<vmem>>, vector<32x128xf32>
    %c0_11 = arith.constant 0 : index
    %c0_12 = arith.constant 0 : index
    %24 = vector.load %arg7[%c0_11, %c0_12] : memref<1x128xf32, #tpu.memory_space<vmem>>, vector<1x128xf32>
    %cst_13 = arith.constant dense<0.000000e+00> : vector<8x128xf32>
    %25 = tpu.matmul %22, %23, %cst_13 {dimension_numbers = #tpu.dot_dimension_numbers<[1], [0], [0], [1], [0, 0, 1, 1], [], []>} : vector<8x32xf32>, vector<32x128xf32>, vector<8x128xf32> -> vector<8x128xf32>
    %26 = vector.broadcast %24 : vector<1x128xf32> to vector<8x128xf32>
    %27 = arith.addf %25, %26 : vector<8x128xf32>
    %28 = math.tanh %27 : vector<8x128xf32>
    %c0_14 = arith.constant 0 : index
    %c0_15 = arith.constant 0 : index
    %29 = vector.load %arg8[%c0_14, %c0_15] : memref<8x128xf32, #tpu.memory_space<vmem>>, vector<8x128xf32>
    tpu.vector_store %arg8[%c0_14, %c0_15], %28 {strides = array<i32>} : memref<8x128xf32, #tpu.memory_space<vmem>>, vector<8x128xf32>,
    return
  }
  func.func @transform_0(%arg0: i32) -> (i32, i32) {
    %c0_i32 = arith.constant 0 : i32
    %c0_i32_0 = arith.constant 0 : i32
    return %arg0, %c0_i32 : i32, i32
  }
  func.func @transform_1(%arg0: i32) -> (i32, i32) {
    %c0_i32 = arith.constant 0 : i32
    %c0_i32_0 = arith.constant 0 : i32
    %c0_i32_1 = arith.constant 0 : i32
    return %c0_i32, %c0_i32_0 : i32, i32
  }
  func.func @transform_2(%arg0: i32) -> (i32, i32) {
    %c0_i32 = arith.constant 0 : i32
    %c0_i32_0 = arith.constant 0 : i32
    %c0_i32_1 = arith.constant 0 : i32
    return %c0_i32, %c0_i32_0 : i32, i32
  }
  func.func @transform_3(%arg0: i32) -> (i32, i32) {
    %c0_i32 = arith.constant 0 : i32
    %c0_i32_0 = arith.constant 0 : i32
    %c0_i32_1 = arith.constant 0 : i32
    return %c0_i32, %c0_i32_0 : i32, i32
  }
  func.func @transform_4(%arg0: i32) -> (i32, i32) {
    %c0_i32 = arith.constant 0 : i32
    %c0_i32_0 = arith.constant 0 : i32
    %c0_i32_1 = arith.constant 0 : i32
    return %c0_i32, %c0_i32_0 : i32, i32
  }
  func.func @transform_5(%arg0: i32) -> (i32, i32) {
    %c0_i32 = arith.constant 0 : i32
    %c0_i32_0 = arith.constant 0 : i32
    %c0_i32_1 = arith.constant 0 : i32
    return %c0_i32, %c0_i32_0 : i32, i32
  }
  func.func @transform_6(%arg0: i32) -> (i32, i32) {
    %c0_i32 = arith.constant 0 : i32
    %c0_i32_0 = arith.constant 0 : i32
    %c0_i32_1 = arith.constant 0 : i32
    return %c0_i32, %c0_i32_0 : i32, i32
  }
  func.func @transform_7(%arg0: i32) -> (i32, i32) {
    %c0_i32 = arith.constant 0 : i32
    %c0_i32_0 = arith.constant 0 : i32
    return %arg0, %c0_i32 : i32, i32
  }
}

</mosaic_0001>

<llo_original>
// kernel: mlp_forward.1
$region0: #{mlp_forward.1}
  #allocation0 [shape = 'u32[]', space=smem, size = 0x4, offset = 0x4, fixed_abs, tag = 'smem constant byte address 0x4 - core index']
  #allocation1 [shape = 'u32[144,128]{1,0:T(1,128)}', space=vmem, size = 0x12000, scoped, tag = 'internal scratch']
  %s0 = inlined_call_operand.vmem [shape: f32[24,2], index: 0, kind: input, shape index: {}]
  %s1 = inlined_call_operand.vmem [shape: f32[2,32], index: 1, kind: input, shape index: {}]
  %s2 = inlined_call_operand.vmem [shape: f32[1,32], index: 2, kind: input, shape index: {}]
  %s3 = inlined_call_operand.vmem [shape: f32[32,32], index: 3, kind: input, shape index: {}]
  %s4 = inlined_call_operand.vmem [shape: f32[1,32], index: 4, kind: input, shape index: {}]
  %s5 = inlined_call_operand.vmem [shape: f32[32,128], index: 5, kind: input, shape index: {}]
  %s6 = inlined_call_operand.vmem [shape: f32[1,128], index: 6, kind: input, shape index: {}]
  %s7 = inlined_call_operand.vmem [shape: f32[24,128], index: 7, kind: output, shape index: {}]
  %s8 = sld [smem:[#allocation0]]
  $region61: #{mlp_forward.1} parent=0
    _
  %s10 = ssub.s32 1, %s8
  %s11 = scalar_select 0, %s10, %s8
  loop: start=0, step=1, limit=5
  $region2: #{mlp_forward.1} parent=0 // loop_pre_header
    _
  $region3: #{mlp_forward.1} parent=0 // loop_header
    %s13 = sphi 0, %s17
    %p14 = scmp.ge.s32.totalorder %s13, 5
    %s23 = sphi 0, %s25
    %s26 = sphi 0, %s23
    %s27 = sphi 0, %s26
    %s43 = sphi 0, %s27
    %s47 = sphi 0, %s47
    %s49 = sphi 0, %s47
    %s50 = sphi 0, %s49
    %s64 = sphi 0, %s50
    %s68 = sphi 0, %s68
    %s70 = sphi 0, %s68
    %s71 = sphi 0, %s70
    %s85 = sphi 0, %s71
    %s89 = sphi 0, %s89
    %s91 = sphi 0, %s89
    %s92 = sphi 0, %s91
    %s106 = sphi 0, %s92
    %s110 = sphi 0, %s110
    %s112 = sphi 0, %s110
    %s113 = sphi 0, %s112
    %s127 = sphi 0, %s113
    %s131 = sphi 0, %s131
    %s133 = sphi 0, %s131
    %s134 = sphi 0, %s133
    %s148 = sphi 0, %s134
    %s152 = sphi 0, %s152
    %s154 = sphi 0, %s152
    %s155 = sphi 0, %s154
    %s169 = sphi 0, %s155
    %s175 = sphi 0, %s177
    %s178 = sphi 0, %s175
    %s179 = sphi 0, %s178
    %s195 = sphi 0, %s179
  $region4: #{mlp_forward.1} parent=0 // loop_header_branch
    %16 = sbr.rel (%p14) target = $region8
  $region5: #{mlp_forward.1} parent=0 // loop_body
    %s18 = ssub.s32 %s13, 1
    %s19 = ssub.s32 %s13, 2
    %s20 = sadd.s32 %s13, 1
    %s21 = ssub.s32 %s13, %s20
    %p22 = scmp.eq.s32.totalorder %s21, 0
    %s24 = sadd.s32 %s23, 1
    %s25 = scalar_select %p22, %s23, %s24
    %p28 = pneg %p22
    %p29 = scmp.eq.s32.totalorder %s13, 2
    %p30 = por %p28, %p29
    %p31 = scmp.ne.s32.totalorder %s23, %s26
    %p32 = scmp.eq.s32.totalorder %s13, 0
    %p33 = por %p31, %p32
    %p34 = scmp.ne.s32.totalorder %s23, %s26
    %p35 = scmp.eq.s32.totalorder %s18, 2
    %p36 = por %p34, %p35
    %p37 = scmp.ne.s32.totalorder %s26, %s27
    %p38 = scmp.eq.s32.totalorder %s18, 0
    %p39 = por %p37, %p38
    %p40 = scmp.ne.s32.totalorder %s26, %s27
    %p41 = scmp.eq.s32.totalorder %s19, 2
    %p42 = por %p40, %p41
    %p44 = scmp.ne.s32.totalorder %s27, %s43
    %p45 = scmp.eq.s32.totalorder %s19, 0
    %p46 = por %p44, %p45
    %s48 = sadd.s32 %s47, 1
    %p51 = scmp.eq.s32.totalorder %s13, 2
    %p52 = scmp.ne.s32.totalorder %s47, %s49
    %p53 = scmp.eq.s32.totalorder %s13, 0
    %p54 = por %p52, %p53
    %p55 = scmp.ne.s32.totalorder %s47, %s49
    %p56 = scmp.eq.s32.totalorder %s18, 2
    %p57 = por %p55, %p56
    %p58 = scmp.ne.s32.totalorder %s49, %s50
    %p59 = scmp.eq.s32.totalorder %s18, 0
    %p60 = por %p58, %p59
    %p61 = scmp.ne.s32.totalorder %s49, %s50
    %p62 = scmp.eq.s32.totalorder %s19, 2
    %p63 = por %p61, %p62
    %p65 = scmp.ne.s32.totalorder %s50, %s64
    %p66 = scmp.eq.s32.totalorder %s19, 0
    %p67 = por %p65, %p66
    %s69 = sadd.s32 %s68, 1
    %p72 = scmp.eq.s32.totalorder %s13, 2
    %p73 = scmp.ne.s32.totalorder %s68, %s70
    %p74 = scmp.eq.s32.totalorder %s13, 0
    %p75 = por %p73, %p74
    %p76 = scmp.ne.s32.totalorder %s68, %s70
    %p77 = scmp.eq.s32.totalorder %s18, 2
    %p78 = por %p76, %p77
    %p79 = scmp.ne.s32.totalorder %s70, %s71
    %p80 = scmp.eq.s32.totalorder %s18, 0
    %p81 = por %p79, %p80
    %p82 = scmp.ne.s32.totalorder %s70, %s71
    %p83 = scmp.eq.s32.totalorder %s19, 2
    %p84 = por %p82, %p83
    %p86 = scmp.ne.s32.totalorder %s71, %s85
    %p87 = scmp.eq.s32.totalorder %s19, 0
    %p88 = por %p86, %p87
    %s90 = sadd.s32 %s89, 1
    %p93 = scmp.eq.s32.totalorder %s13, 2
    %p94 = scmp.ne.s32.totalorder %s89, %s91
    %p95 = scmp.eq.s32.totalorder %s13, 0
    %p96 = por %p94, %p95
    %p97 = scmp.ne.s32.totalorder %s89, %s91
    %p98 = scmp.eq.s32.totalorder %s18, 2
    %p99 = por %p97, %p98
    %p100 = scmp.ne.s32.totalorder %s91, %s92
    %p101 = scmp.eq.s32.totalorder %s18, 0
    %p102 = por %p100, %p101
    %p103 = scmp.ne.s32.totalorder %s91, %s92
    %p104 = scmp.eq.s32.totalorder %s19, 2
    %p105 = por %p103, %p104
    %p107 = scmp.ne.s32.totalorder %s92, %s106
    %p108 = scmp.eq.s32.totalorder %s19, 0
    %p109 = por %p107, %p108
    %s111 = sadd.s32 %s110, 1
    %p114 = scmp.eq.s32.totalorder %s13, 2
    %p115 = scmp.ne.s32.totalorder %s110, %s112
    %p116 = scmp.eq.s32.totalorder %s13, 0
    %p117 = por %p115, %p116
    %p118 = scmp.ne.s32.totalorder %s110, %s112
    %p119 = scmp.eq.s32.totalorder %s18, 2
    %p120 = por %p118, %p119
    %p121 = scmp.ne.s32.totalorder %s112, %s113
    %p122 = scmp.eq.s32.totalorder %s18, 0
    %p123 = por %p121, %p122
    %p124 = scmp.ne.s32.totalorder %s112, %s113
    %p125 = scmp.eq.s32.totalorder %s19, 2
    %p126 = por %p124, %p125
    %p128 = scmp.ne.s32.totalorder %s113, %s127
    %p129 = scmp.eq.s32.totalorder %s19, 0
    %p130 = por %p128, %p129
    %s132 = sadd.s32 %s131, 1
    %p135 = scmp.eq.s32.totalorder %s13, 2
    %p136 = scmp.ne.s32.totalorder %s131, %s133
    %p137 = scmp.eq.s32.totalorder %s13, 0
    %p138 = por %p136, %p137
    %p139 = scmp.ne.s32.totalorder %s131, %s133
    %p140 = scmp.eq.s32.totalorder %s18, 2
    %p141 = por %p139, %p140
    %p142 = scmp.ne.s32.totalorder %s133, %s134
    %p143 = scmp.eq.s32.totalorder %s18, 0
    %p144 = por %p142, %p143
    %p145 = scmp.ne.s32.totalorder %s133, %s134
    %p146 = scmp.eq.s32.totalorder %s19, 2
    %p147 = por %p145, %p146
    %p149 = scmp.ne.s32.totalorder %s134, %s148
    %p150 = scmp.eq.s32.totalorder %s19, 0
    %p151 = por %p149, %p150
    %s153 = sadd.s32 %s152, 1
    %p156 = scmp.eq.s32.totalorder %s13, 2
    %p157 = scmp.ne.s32.totalorder %s152, %s154
    %p158 = scmp.eq.s32.totalorder %s13, 0
    %p159 = por %p157, %p158
    %p160 = scmp.ne.s32.totalorder %s152, %s154
    %p161 = scmp.eq.s32.totalorder %s18, 2
    %p162 = por %p160, %p161
    %p163 = scmp.ne.s32.totalorder %s154, %s155
    %p164 = scmp.eq.s32.totalorder %s18, 0
    %p165 = por %p163, %p164
    %p166 = scmp.ne.s32.totalorder %s154, %s155
    %p167 = scmp.eq.s32.totalorder %s19, 2
    %p168 = por %p166, %p167
    %p170 = scmp.ne.s32.totalorder %s155, %s169
    %p171 = scmp.eq.s32.totalorder %s19, 0
    %p172 = por %p170, %p171
    %s173 = ssub.s32 %s13, %s20
    %p174 = scmp.eq.s32.totalorder %s173, 0
    %s176 = sadd.s32 %s175, 1
    %s177 = scalar_select %p174, %s175, %s176
    %p180 = pneg %p174
    %p181 = scmp.eq.s32.totalorder %s13, 2
    %p182 = por %p180, %p181
    %p183 = scmp.ne.s32.totalorder %s175, %s178
    %p184 = scmp.eq.s32.totalorder %s13, 0
    %p185 = por %p183, %p184
    %p186 = scmp.ne.s32.totalorder %s175, %s178
    %p187 = scmp.eq.s32.totalorder %s18, 2
    %p188 = por %p186, %p187
    %p189 = scmp.ne.s32.totalorder %s178, %s179
    %p190 = scmp.eq.s32.totalorder %s18, 0
    %p191 = por %p189, %p190
    %p192 = scmp.ne.s32.totalorder %s178, %s179
    %p193 = scmp.eq.s32.totalorder %s19, 2
    %p194 = por %p192, %p193
    %p196 = scmp.ne.s32.totalorder %s179, %s195
    %p197 = scmp.eq.s32.totalorder %s19, 0
    %p198 = por %p196, %p197
    %p199 = scmp.le.s32.totalorder 1, %s13
    %p200 = scmp.lt.s32.totalorder %s13, 4
    %p201 = pnand %p199, %p200
    %p202 = pneg %p201
    // Predicated region
    $region9: #{mlp_forward.1} parent=5 // pred_check
      _
    $region10: #{mlp_forward.1} parent=5 // pred_check_branch
      %204 = sbr.rel (%p201) target = $region12
    $region11: #{mlp_forward.1} parent=5 // pred_region
      %s205 = ssub.s32 %s13, 1
      // Predicated region
      $region13: #{mlp_forward.1} parent=11 // pred_check
        %p206 = pneg %p60
      $region14: #{mlp_forward.1} parent=11 // pred_check_branch
        %208 = sbr.rel (%p206) target = $region16
      $region15: #{mlp_forward.1} parent=11 // pred_region
        _
      $region16: #{mlp_forward.1} parent=11 // pred_fallthru
        _
      // Predicated region
      $region17: #{mlp_forward.1} parent=11 // pred_check
        %p209 = pneg %p81
      $region18: #{mlp_forward.1} parent=11 // pred_check_branch
        %211 = sbr.rel (%p209) target = $region20
      $region19: #{mlp_forward.1} parent=11 // pred_region
        _
      $region20: #{mlp_forward.1} parent=11 // pred_fallthru
        _
      // Predicated region
      $region21: #{mlp_forward.1} parent=11 // pred_check
        %p212 = pneg %p102
      $region22: #{mlp_forward.1} parent=11 // pred_check_branch
        %214 = sbr.rel (%p212) target = $region24
      $region23: #{mlp_forward.1} parent=11 // pred_region
        _
      $region24: #{mlp_forward.1} parent=11 // pred_fallthru
        _
      // Predicated region
      $region25: #{mlp_forward.1} parent=11 // pred_check
        %p215 = pneg %p123
      $region26: #{mlp_forward.1} parent=11 // pred_check_branch
        %217 = sbr.rel (%p215) target = $region28
      $region27: #{mlp_forward.1} parent=11 // pred_region
        _
      $region28: #{mlp_forward.1} parent=11 // pred_fallthru
        _
      // Predicated region
      $region29: #{mlp_forward.1} parent=11 // pred_check
        %p218 = pneg %p144
      $region30: #{mlp_forward.1} parent=11 // pred_check_branch
        %220 = sbr.rel (%p218) target = $region32
      $region31: #{mlp_forward.1} parent=11 // pred_region
        _
      $region32: #{mlp_forward.1} parent=11 // pred_fallthru
        _
      // Predicated region
      $region33: #{mlp_forward.1} parent=11 // pred_check
        %p221 = pneg %p165
      $region34: #{mlp_forward.1} parent=11 // pred_check_branch
        %223 = sbr.rel (%p221) target = $region36
      $region35: #{mlp_forward.1} parent=11 // pred_region
        _
      $region36: #{mlp_forward.1} parent=11 // pred_fallthru
        _
    $region12: #{mlp_forward.1} parent=5 // pred_fallthru
      _
    %p224 = scmp.lt.s32.totalorder %s13, 3
    // Predicated region
    $region37: #{mlp_forward.1} parent=5 // pred_check
      %p225 = pneg %p224
    $region38: #{mlp_forward.1} parent=5 // pred_check_branch
      %227 = sbr.rel (%p225) target = $region40
    $region39: #{mlp_forward.1} parent=5 // pred_region
      // Predicated region
      $region41: #{mlp_forward.1} parent=39 // pred_check
        %p228 = pneg %p33
      $region42: #{mlp_forward.1} parent=39 // pred_check_branch
        %230 = sbr.rel (%p228) target = $region44
      $region43: #{mlp_forward.1} parent=39 // pred_region
        %p231 = scmp.lt.s32.totalorder %s13, 2
        %s232 = scalar_select %p231, %s13, 2
        %s233 = smul.addr %s232, 8
        %s234 = scalar_lea.vmem %s0, %s233
      $region44: #{mlp_forward.1} parent=39 // pred_fallthru
        _
    $region40: #{mlp_forward.1} parent=5 // pred_fallthru
      _
    %p235 = scmp.le.s32.totalorder 1, %s13
    %p236 = scmp.lt.s32.totalorder %s13, 4
    %p237 = pnand %p235, %p236
    %p238 = pneg %p237
    // Predicated region
    $region45: #{mlp_forward.1} parent=5 // pred_check
      _
    $region46: #{mlp_forward.1} parent=5 // pred_check_branch
      %240 = sbr.rel (%p237) target = $region48
    $region47: #{mlp_forward.1} parent=5 // pred_region
      %s241 = ssub.s32 %s13, 1
      %p242 = scmp.lt.s32.totalorder %s18, 2
      %s243 = scalar_select %p242, %s18, 2
      %s244 = smul.addr %s243, 8
      %s245 = scalar_lea.vmem %s0, %s244
      %p246 = pneg %p39
      %p247 = pneg %p36
      %p248 = pneg %p60
      %p249 = pneg %p57
      %p250 = pneg %p81
      %p251 = pneg %p78
      %p252 = pneg %p102
      %p253 = pneg %p99
      %p254 = pneg %p123
      %p255 = pneg %p120
      %p256 = pneg %p144
      %p257 = pneg %p141
      %p258 = pneg %p165
      %p259 = pneg %p162
      %p260 = pneg %p191
      %p261 = pneg %p188
      %p262 = scmp.lt.s32.totalorder %s18, 2
      %s263 = scalar_select %p262, %s18, 2
      %s264 = smul.addr %s263, 8
      %s265 = scalar_lea.vmem %s7, %s264
      %p266 = scmp.lt.s32.totalorder %s18, 2
      %s267 = scalar_select %p266, %s18, 2
      %s268 = smul.addr %s267, 8
      %s269 = scalar_lea.vmem %s0, %s268
      %p270 = scmp.lt.s32.totalorder %s18, 2
      %s271 = scalar_select %p270, %s18, 2
      %s272 = smul.addr %s271, 8
      %s273 = scalar_lea.vmem %s7, %s272
      %v274 = vld [vmem:[%s269] sm:$0xff]
      %v275 = vld [vmem:[%s1] sm:$0x3]
      %v276 = vld [vmem:[%s2] sm:$0x1]
      %278 = vset.pattern.permute.xlu0 0
      %279 = vperm.xlu0 %278, %v274
      %v280 = vpop.permute.xlu0 %279
      %v282 = vlaneseq
      %v283 = vshrl.u32 %v282, 7
      %v284 = vsub.s32 0, %v283
      %v285 = vrot.slane %v275, %v284
      %v286 = vmul.f32 %v280, %v285
      %287 = vset.pattern.permute.xlu0 1
      %288 = vperm.xlu0 %287, %v274
      %v289 = vpop.permute.xlu0 %288
      %v291 = vlaneseq
      %v292 = vshrl.u32 %v291, 7
      %v293 = vsub.s32 1, %v292
      %v294 = vrot.slane %v275, %v293
      %v295 = vmul.f32 %v289, %v294
      %v296 = vadd.f32 %v286, %v295
      %v298 = vlaneseq
      %v299 = vshrl.u32 %v298, 7
      %v300 = vsub.s32 0, %v299
      %v301 = vrot.slane %v276, %v300
      %v303 = vadd.f32 %v296, %v301
      %v304 = vtanh.pop %v303
      %v305 = vld [vmem:[%s3] sm:$0xff]
      %v306 = vld [vmem:[%s3 + $0x8] sm:$0xff]
      %v307 = vld [vmem:[%s3 + $0x10] sm:$0xff]
      %v308 = vld [vmem:[%s3 + $0x18] sm:$0xff]
      %v309 = vld [vmem:[%s4] sm:$0x1]
      %v311 = vlaneseq
      %v312 = vshrl.u32 %v311, 7
      %v313 = vsub.s32 0, %v312
      %v314 = vrot.slane %v309, %v313
      %vm316 = vcmask 261120
      %v318 = vsel %vm316, %v304, 0
      %320 = vmatprep.subr.mxu0 0.0
      %321 = vmatpush1.msra.mxu0 %v305
      %322 = vmatprep.subr.mxu0 0.0
      %323 = vmatpush1.msra.mxu0 %v306
      %324 = vmatprep.subr.mxu0 0.0
      %325 = vmatpush1.msra.mxu0 %v307
      %326 = vmatprep.subr.mxu0 0.0
      %327 = vmatpush1.msra.mxu0 %v308
      %328 = vmatprep.subr.mxu0 0.0
      %329 = vmatpush1.msra.mxu0 0.0
      %330 = vmatprep.subr.mxu0 0.0
      %331 = vmatpush1.msra.mxu0 0.0
      %332 = vmatprep.subr.mxu0 0.0
      %333 = vmatpush1.msra.mxu0 0.0
      %334 = vmatprep.subr.mxu0 0.0
      %335 = vmatpush1.msra.mxu0 0.0
      %336 = vmatprep.subr.mxu0 0.0
      %337 = vmatpush1.msra.mxu0 0.0
      %338 = vmatprep.subr.mxu0 0.0
      %339 = vmatpush1.msra.mxu0 0.0
      %340 = vmatprep.subr.mxu0 0.0
      %341 = vmatpush1.msra.mxu0 0.0
      %342 = vmatprep.subr.mxu0 0.0
      %343 = vmatpush1.msra.mxu0 0.0
      %344 = vmatprep.subr.mxu0 0.0
      %345 = vmatpush1.msra.mxu0 0.0
      %346 = vmatprep.subr.mxu0 0.0
      %347 = vmatpush1.msra.mxu0 0.0
      %348 = vmatprep.subr.mxu0 0.0
      %349 = vmatpush1.msra.mxu0 0.0
      %350 = vmatprep.subr.mxu0 0.0
      %351 = vmatpush1.msra.mxu0 0.0
      %352 = vmatprep.subr.mxu0 0.0
      %353 = vmatpush1.msra.mxu0 0.0
      %354 = vmatprep.subr.mxu0 0.0
      %355 = vmatpush1.msra.mxu0 0.0
      %356 = vmatprep.subr.mxu0 0.0
      %357 = vmatpush1.msra.mxu0 0.0
      %358 = vmatprep.subr.mxu0 0.0
      %359 = vmatpush1.msra.mxu0 0.0
      %360 = vmatprep.subr.mxu0 0.0
      %361 = vmatpush1.msra.mxu0 0.0
      %362 = vmatprep.subr.mxu0 0.0
      %363 = vmatpush1.msra.mxu0 0.0
      %364 = vmatprep.subr.mxu0 0.0
      %365 = vmatpush1.msra.mxu0 0.0
      %366 = vmatprep.subr.mxu0 0.0
      %367 = vmatpush1.msra.mxu0 0.0
      %368 = vmatprep.subr.mxu0 0.0
      %369 = vmatpush1.msra.mxu0 0.0
      %370 = vmatprep.subr.mxu0 0.0
      %371 = vmatpush1.msra.mxu0 0.0
      %372 = vmatprep.subr.mxu0 0.0
      %373 = vmatpush1.msra.mxu0 0.0
      %374 = vmatprep.subr.mxu0 0.0
      %375 = vmatpush1.msra.mxu0 0.0
      %376 = vmatprep.subr.mxu0 0.0
      %377 = vmatpush1.msra.mxu0 0.0
      %378 = vmatprep.subr.mxu0 0.0
      %379 = vmatpush1.msra.mxu0 0.0
      %380 = vmatprep.subr.mxu0 0.0
      %381 = vmatpush1.msra.mxu0 0.0
      %382 = vmatprep.subr.mxu0 0.0
      %383 = vmatpush1.msra.mxu0 0.0
      %384 = vmatprep.mubr.f32.mxu0 0.0
      %385 = vmatmul.mubr.f32.gmra.mrb[0].mxu0 %v318
      %v386 = vpop.f32.mrb[0].mxu0
      %v387 = vadd.f32 %v314, %v386
      %v388 = vpop.f32.mrb[0].mxu0
      %389 = vdwg.mxu0
      %v390 = vtanh.pop %v387
      %v391 = vld [vmem:[%s5] sm:$0xff]
      %v392 = vld [vmem:[%s5 + $0x8] sm:$0xff]
      %v393 = vld [vmem:[%s5 + $0x10] sm:$0xff]
      %v394 = vld [vmem:[%s5 + $0x18] sm:$0xff]
      %v395 = vld [vmem:[%s6] sm:$0x1]
      %v397 = vlaneseq
      %v398 = vshrl.u32 %v397, 7
      %v399 = vsub.s32 0, %v398
      %v400 = vrot.slane %v395, %v399
      %v403 = vsel %vm316, %v390, 0
      %405 = vmatprep.subr.mxu0 0.0
      %406 = vmatpush1.msra.mxu0 %v391
      %407 = vmatprep.subr.mxu0 0.0
      %408 = vmatpush1.msra.mxu0 %v392
      %409 = vmatprep.subr.mxu0 0.0
      %410 = vmatpush1.msra.mxu0 %v393
      %411 = vmatprep.subr.mxu0 0.0
      %412 = vmatpush1.msra.mxu0 %v394
      %413 = vmatprep.subr.mxu0 0.0
      %414 = vmatpush1.msra.mxu0 0.0
      %415 = vmatprep.subr.mxu0 0.0
      %416 = vmatpush1.msra.mxu0 0.0
      %417 = vmatprep.subr.mxu0 0.0
      %418 = vmatpush1.msra.mxu0 0.0
      %419 = vmatprep.subr.mxu0 0.0
      %420 = vmatpush1.msra.mxu0 0.0
      %421 = vmatprep.subr.mxu0 0.0
      %422 = vmatpush1.msra.mxu0 0.0
      %423 = vmatprep.subr.mxu0 0.0
      %424 = vmatpush1.msra.mxu0 0.0
      %425 = vmatprep.subr.mxu0 0.0
      %426 = vmatpush1.msra.mxu0 0.0
      %427 = vmatprep.subr.mxu0 0.0
      %428 = vmatpush1.msra.mxu0 0.0
      %429 = vmatprep.subr.mxu0 0.0
      %430 = vmatpush1.msra.mxu0 0.0
      %431 = vmatprep.subr.mxu0 0.0
      %432 = vmatpush1.msra.mxu0 0.0
      %433 = vmatprep.subr.mxu0 0.0
      %434 = vmatpush1.msra.mxu0 0.0
      %435 = vmatprep.subr.mxu0 0.0
      %436 = vmatpush1.msra.mxu0 0.0
      %437 = vmatprep.subr.mxu0 0.0
      %438 = vmatpush1.msra.mxu0 0.0
      %439 = vmatprep.subr.mxu0 0.0
      %440 = vmatpush1.msra.mxu0 0.0
      %441 = vmatprep.subr.mxu0 0.0
      %442 = vmatpush1.msra.mxu0 0.0
      %443 = vmatprep.subr.mxu0 0.0
      %444 = vmatpush1.msra.mxu0 0.0
      %445 = vmatprep.subr.mxu0 0.0
      %446 = vmatpush1.msra.mxu0 0.0
      %447 = vmatprep.subr.mxu0 0.0
      %448 = vmatpush1.msra.mxu0 0.0
      %449 = vmatprep.subr.mxu0 0.0
      %450 = vmatpush1.msra.mxu0 0.0
      %451 = vmatprep.subr.mxu0 0.0
      %452 = vmatpush1.msra.mxu0 0.0
      %453 = vmatprep.subr.mxu0 0.0
      %454 = vmatpush1.msra.mxu0 0.0
      %455 = vmatprep.subr.mxu0 0.0
      %456 = vmatpush1.msra.mxu0 0.0
      %457 = vmatprep.subr.mxu0 0.0
      %458 = vmatpush1.msra.mxu0 0.0
      %459 = vmatprep.subr.mxu0 0.0
      %460 = vmatpush1.msra.mxu0 0.0
      %461 = vmatprep.subr.mxu0 0.0
      %462 = vmatpush1.msra.mxu0 0.0
      %463 = vmatprep.subr.mxu0 0.0
      %464 = vmatpush1.msra.mxu0 0.0
      %465 = vmatprep.subr.mxu0 0.0
      %466 = vmatpush1.msra.mxu0 0.0
      %467 = vmatprep.subr.mxu0 0.0
      %468 = vmatpush1.msra.mxu0 0.0
      %469 = vmatprep.mubr.f32.mxu0 0.0
      %470 = vmatmul.mubr.f32.gmra.mrb[0].mxu0 %v403
      %v471 = vpop.f32.mrb[0].mxu0
      %v472 = vadd.f32 %v400, %v471
      %v473 = vpop.f32.mrb[0].mxu0
      %474 = vdwg.mxu0
      %v475 = vtanh.pop %v472
      %476 = vst [vmem:[%s273] sm:$0xff] %v475
      %p477 = scmp.lt.s32.totalorder %s18, 2
      %s478 = scalar_select %p477, %s18, 2
      %s479 = smul.addr %s478, 8
      %s480 = scalar_lea.vmem %s7, %s479
      // Predicated region
      $region49: #{mlp_forward.1} parent=47 // pred_check
        %p481 = pneg %p188
      $region50: #{mlp_forward.1} parent=47 // pred_check_branch
        %483 = sbr.rel (%p481) target = $region52
      $region51: #{mlp_forward.1} parent=47 // pred_region
        _
      $region52: #{mlp_forward.1} parent=47 // pred_fallthru
        _
    $region48: #{mlp_forward.1} parent=5 // pred_fallthru
      _
    %p484 = scmp.le.s32.totalorder 2, %s13
    // Predicated region
    $region53: #{mlp_forward.1} parent=5 // pred_check
      %p485 = pneg %p484
    $region54: #{mlp_forward.1} parent=5 // pred_check_branch
      %487 = sbr.rel (%p485) target = $region56
    $region55: #{mlp_forward.1} parent=5 // pred_region
      %s488 = ssub.s32 %s13, 2
      // Predicated region
      $region57: #{mlp_forward.1} parent=55 // pred_check
        %p489 = pneg %p194
      $region58: #{mlp_forward.1} parent=55 // pred_check_branch
        %491 = sbr.rel (%p489) target = $region60
      $region59: #{mlp_forward.1} parent=55 // pred_region
        %p492 = scmp.lt.s32.totalorder %s19, 2
        %s493 = scalar_select %p492, %s19, 2
        %s494 = smul.addr %s493, 8
        %s495 = scalar_lea.vmem %s7, %s494
      $region60: #{mlp_forward.1} parent=55 // pred_fallthru
        _
    $region56: #{mlp_forward.1} parent=5 // pred_fallthru
      _
  $region6: #{mlp_forward.1} parent=0 // loop_footer
    %s17 = sadd.s32 1, %s13
  $region7: #{mlp_forward.1} parent=0 // loop_footer_branch
    %12 = sbr.rel target = $region3
  $region8: #{mlp_forward.1} parent=0 // loop_exit
    _

</llo_original>
